<compile_context>
chip_gen: v7x
topology: tpu7x:2x2x1
jax: 0.10.0
libtpu: 0.0.40
codegen_flags: <defaults>
</compile_context>

<pallas_src>
import functools

import jax
import jax.numpy as jnp
import numpy as np
from jax.experimental import pallas as pl
from jax.experimental.pallas import tpu as pltpu


_VMEM_INPUT_BUDGET = 8 * 1024 * 1024   # double-buffered input working set target
_MAX_TN = 64 * 1024                    # upper cap on the batch tile width


def _round_up(x, m):
    return (x + m - 1) // m * m


def _choose_tiling(n, j, max_tn=None):
    """Pick (num_tiles, tn) for the 1-D batch grid."""
    n128 = _round_up(max(n, 1), 128)
    j_sub = _round_up(j, 8)
    # Per-column VMEM of the double-buffered inputs: f32 logits sublane-padded
    # to 8 rows + the (1, tn) int32 idx block, which also pads to 8 sublanes.
    per_col = (j_sub + 8) * 4 * 2
    tn_cap = (_VMEM_INPUT_BUDGET // per_col) // 128 * 128
    tn_cap = max(128, min(tn_cap, _MAX_TN if max_tn is None else max_tn))

    num_tiles = -(-n128 // tn_cap)
    if num_tiles < 2 and n128 >= 256:
        num_tiles = 2           # keep both v7x TensorCores busy when possible
    tn = _round_up(-(-n128 // num_tiles), 128)
    return num_tiles, tn


def _cdwce_kernel(yp_ref, idx_ref, out_ref, *, alpha, num_classes, nw, tbl):
    # yp:  (J, TN) logits, class axis on sublanes, batch lane-dense.
    # idx: (1, TN) int32 target class per batch column (0 on padded columns).
    yp = yp_ref[...].astype(jnp.float32)
    idx = idx_ref[...]
    j, tn = yp.shape

    # s = sum_j exp(y_pred) per batch column (sublane reduction).
    # Padded batch columns hold -1e9 -> exp == 0 -> l12 == 0 exactly (self-masking).
    e = jnp.exp(yp)
    s = jnp.sum(e, axis=0, keepdims=True)                       # (1, TN)
    l12 = jnp.log(s - e + 1e-8) - jnp.log(s + 1e-8)             # (J, TN)

    j_iota = jax.lax.broadcasted_iota(jnp.int32, (j, tn), 0)

    if tbl is None:
        # Small-J path: |i - y|^alpha and the per-target class weight built from
        # scalar-constant selects -> pure VPU work, no EUP pow, no MXU.
        d = jnp.abs(j_iota - idx)                               # (J, TN) int32
        if alpha == 1.0:
            w = d.astype(jnp.float32)
        else:
            w = jnp.zeros((j, tn), jnp.float32)
            for k in range(num_classes):
                v = float(k) ** alpha
                if v != 0.0:
                    w = w + jnp.where(d == k, jnp.float32(v), 0.0)
        if nw is not None:
            sw = jnp.zeros((1, tn), jnp.float32)
            for c in range(num_classes):
                sw = sw + jnp.where(idx == c, jnp.float32(nw[c]), 0.0)
            w = w * sw
    else:
        # Larger-J path: one-hot target + (J, J) constant table lookup on the
        # otherwise-idle MXU (table already folds in the class weights).
        one_hot = (j_iota == idx).astype(jnp.float32)           # (J, TN)
        w = jnp.dot(jnp.asarray(tbl), one_hot,
                    preferred_element_type=jnp.float32)         # (J, TN)

    loss = l12 * w
    col = jnp.sum(loss, axis=0, keepdims=True)                  # (1, TN) sublane reduce
    total = jnp.sum(col, axis=1, keepdims=True)                 # (1, 1)  lane reduce

    # Per-tile partial sum, broadcast into the minimal legal (8,128) VMEM block.
    out_ref[...] = jnp.broadcast_to(total.reshape(1, 1, 1), out_ref.shape)


def cdwce_loss(y_pred, y_true, num_classes, alpha=0.5, weight=None, max_tn=None):
    """Pallas TPU implementation of dlordinal CDWCELoss.forward.

    `weight` (like the PyTorch module's constructor arg) must be a concrete
    array; it is normalised and baked into the kernel as constants.
    """
    y_pred = jnp.asarray(y_pred)
    if y_pred.dtype == jnp.bfloat16:
        pass                                   # keep bf16 through HBM, cast in-kernel
    elif y_pred.dtype != jnp.float32:
        y_pred = y_pred.astype(jnp.float32)    # f64 / bf-like / int -> f32
    n, j = y_pred.shape
    assert j == num_classes

    y_true = jnp.asarray(y_true)
    if y_true.ndim > 1:
        idx = jnp.argmax(y_true, axis=1).astype(jnp.int32)
    else:
        idx = y_true.astype(jnp.int32).reshape(-1)

    # Normalised class weights -> compile-time constants (no per-sample stream).
    if weight is not None:
        nw_np = np.asarray(weight, np.float32)
        nw_np = nw_np / nw_np.sum()
        nw = tuple(float(x) for x in nw_np)
    else:
        nw = None

    # Lookup strategy for |i - y|^alpha (* nw[y]).
    if j <= 16:
        tbl = None
    else:
        c = np.arange(j)
        tbl = (np.abs(c[:, None] - c[None, :]).astype(np.float64) ** alpha
               ).astype(np.float32)
        if nw is not None:
            tbl = tbl * np.asarray(nw, np.float32)[None, :]

    num_tiles, tn = _choose_tiling(n, j, max_tn)
    n_pad = num_tiles * tn

    # Lane-dense (J, N) layout; one fused transpose+pad pass under jit. The
    # class axis is left unpadded (block dim == full dim). Padded batch columns
    # are -1e9 -> exp underflows to 0 -> contribute exactly 0 (no mask needed).
    yp_t = jnp.pad(y_pred.T, ((0, 0), (0, n_pad - n)), constant_values=-1e9)
    idx_p = jnp.pad(idx, (0, n_pad - n)).reshape(1, n_pad)

    kernel = functools.partial(_cdwce_kernel, alpha=float(alpha),
                               num_classes=j, nw=nw, tbl=tbl)

    partials = pl.pallas_call(
        kernel,
        out_shape=jax.ShapeDtypeStruct((num_tiles, 8, 128), jnp.float32),
        grid=(num_tiles,),
        in_specs=[
            pl.BlockSpec((j, tn), lambda i: (0, i)),   # logits tile (J rows only)
            pl.BlockSpec((1, tn), lambda i: (0, i)),   # target indices
        ],
        out_specs=pl.BlockSpec((1, 8, 128), lambda i: (i, 0, 0)),
        compiler_params=pltpu.CompilerParams(
            dimension_semantics=("parallel",),
        ),
    )(yp_t, idx_p)

    total = jnp.sum(partials[:, 0, 0])
    return -total / jnp.float32(n)


def _reference(y_pred, y_true, num_classes, alpha=0.5, weight=None):
    """Pure-JAX reference mirroring the PyTorch module."""
    y_pred = jnp.asarray(y_pred, jnp.float32)
    y_true = jnp.asarray(y_true)
    if y_true.ndim > 1:
        idx = jnp.argmax(y_true, axis=1).reshape(-1, 1)
    else:
        idx = y_true.reshape(-1, 1).astype(jnp.int32)
    n, j = y_pred.shape
    e = jnp.exp(y_pred)
    s = jnp.sum(e, axis=1, keepdims=True)
    l12 = jnp.log(s - e + 1e-8) - jnp.log(s + 1e-8)
    i_idx = jnp.broadcast_to(jnp.arange(j)[None, :], (n, j))
    w = jnp.abs(i_idx - idx).astype(jnp.float32) ** alpha
    loss = l12 * w
    if weight is not None:
        wgt = jnp.asarray(weight, jnp.float32)
        nw = wgt / jnp.sum(wgt)
        loss = loss * nw[idx[:, 0]].reshape(-1, 1)
    return -jnp.sum(loss) / n


if __name__ == "__main__":
    key = jax.random.PRNGKey(0)
    k1, k2, k3, k4, k5, k6, k7 = jax.random.split(key, 7)

    # Case 1: small batch, one-hot targets, per-class weights, alpha=0.5.
    N, J = 8, 4
    y_pred = jax.random.normal(k1, (N, J), dtype=jnp.float32)
    labels = jax.random.randint(k2, (N,), 0, J)
    y_true = jax.nn.one_hot(labels, J, dtype=jnp.float32)
    class_w = np.arange(1.0, J + 1.0, dtype=np.float32)

    f1 = jax.jit(functools.partial(cdwce_loss, num_classes=J, alpha=0.5,
                                   weight=class_w))
    out1 = jax.block_until_ready(f1(y_pred, y_true))
    ref1 = _reference(y_pred, y_true, J, alpha=0.5, weight=class_w)
    np.testing.assert_allclose(np.asarray(out1), np.asarray(ref1),
                               rtol=1e-4, atol=1e-5)

    # Case 2: integer labels, no weights, alpha=1.0, batch forced over 3 tiles
    # (exercises the multi-tile "parallel" grid + padded-column self-masking).
    N2, J2 = 300, 4
    y_pred2 = jax.random.normal(k3, (N2, J2), dtype=jnp.float32)
    labels2 = jax.random.randint(k4, (N2,), 0, J2)
    f2 = jax.jit(functools.partial(cdwce_loss, num_classes=J2, alpha=1.0,
                                   max_tn=128))
    out2 = jax.block_until_ready(f2(y_pred2, labels2))
    ref2 = _reference(y_pred2, labels2, J2, alpha=1.0)
    np.testing.assert_allclose(np.asarray(out2), np.asarray(ref2),
                               rtol=1e-4, atol=1e-5)

    # Case 3: odd batch, J=6, fractional alpha, with class weights.
    N3, J3 = 129, 6
    y_pred3 = jax.random.normal(k5, (N3, J3), dtype=jnp.float32) * 2.0
    labels3 = jax.random.randint(k6, (N3,), 0, J3)
    class_w3 = np.linspace(0.5, 2.0, J3).astype(np.float32)
    f3 = jax.jit(functools.partial(cdwce_loss, num_classes=J3, alpha=1.7,
                                   weight=class_w3))
    out3 = jax.block_until_ready(f3(y_pred3, labels3))
    ref3 = _reference(y_pred3, labels3, J3, alpha=1.7, weight=class_w3)
    np.testing.assert_allclose(np.asarray(out3), np.asarray(ref3),
                               rtol=1e-4, atol=1e-5)

    # Case 4: bf16 logits are kept bf16 through HBM and cast in-kernel.
    N4, J4 = 64, 4
    y_pred4 = jax.random.normal(k7, (N4, J4), dtype=jnp.float32).astype(jnp.bfloat16)
    labels4 = jax.random.randint(k2, (N4,), 0, J4)
    f4 = jax.jit(functools.partial(cdwce_loss, num_classes=J4, alpha=0.5))
    out4 = jax.block_until_ready(f4(y_pred4, labels4))
    ref4 = _reference(y_pred4, labels4, J4, alpha=0.5)
    np.testing.assert_allclose(np.asarray(out4), np.asarray(ref4),
                               rtol=1e-4, atol=1e-5)

    print("KERNEL_OK")
</pallas_src>

<mosaic_0001>
module attributes {stable_mosaic.version = 11 : i64} {
  func.func @_cdwce_kernel(%arg0: i32, %arg1: memref<4x128xf32, #tpu.memory_space<vmem>>, %arg2: memref<1x128xi32, #tpu.memory_space<vmem>>, %arg3: memref<1x8x128xf32, #tpu.memory_space<vmem>>) attributes {dimension_semantics = [#tpu.dimension_semantics<parallel>], iteration_bounds = array<i64: 1>, scalar_prefetch = 0 : i64, scratch_operands = 0 : i64, tpu.core_type = #tpu.core_type<tc>, window_params = [{transform_indices = @transform_0, window_bounds = array<i64: 4, 128>}, {transform_indices = @transform_1, window_bounds = array<i64: 1, 128>}, {transform_indices = @transform_2, window_bounds = array<i64: 1, 8, 128>}]} {
    %c0 = arith.constant 0 : index
    %c0_0 = arith.constant 0 : index
    %0 = vector.load %arg1[%c0, %c0_0] : memref<4x128xf32, #tpu.memory_space<vmem>>, vector<4x128xf32>
    %c0_1 = arith.constant 0 : index
    %c0_2 = arith.constant 0 : index
    %1 = vector.load %arg2[%c0_1, %c0_2] : memref<1x128xi32, #tpu.memory_space<vmem>>, vector<1x128xi32>
    %2 = math.exp %0 : vector<4x128xf32>
    %cst = arith.constant dense<0.000000e+00> : vector<128xf32>
    %3 = vector.multi_reduction <add>, %2, %cst [0] : vector<4x128xf32> to vector<128xf32>
    %4 = vector.shape_cast %3 : vector<128xf32> to vector<1x128xf32>
    %5 = vector.broadcast %4 : vector<1x128xf32> to vector<4x128xf32>
    %6 = arith.subf %5, %2 : vector<4x128xf32>
    %cst_3 = arith.constant 9.99999993E-9 : f32
    %7 = vector.broadcast %cst_3 : f32 to vector<4x128xf32>
    %8 = arith.addf %6, %7 : vector<4x128xf32>
    %9 = math.log %8 : vector<4x128xf32>
    %cst_4 = arith.constant 9.99999993E-9 : f32
    %10 = vector.broadcast %cst_4 : f32 to vector<1x128xf32>
    %11 = arith.addf %4, %10 : vector<1x128xf32>
    %12 = math.log %11 : vector<1x128xf32>
    %13 = vector.broadcast %12 : vector<1x128xf32> to vector<4x128xf32>
    %14 = arith.subf %9, %13 : vector<4x128xf32>
    %15 = tpu.iota {dimensions = array<i32: 0>} : vector<4x128xi32>
    %16 = vector.broadcast %1 : vector<1x128xi32> to vector<4x128xi32>
    %17 = arith.subi %15, %16 : vector<4x128xi32>
    %18 = math.absi %17 : vector<4x128xi32>
    %cst_5 = arith.constant 0.000000e+00 : f32
    %19 = vector.broadcast %cst_5 : f32 to vector<4x128xf32>
    %c1_i32 = arith.constant 1 : i32
    %20 = vector.broadcast %c1_i32 : i32 to vector<4x128xi32>
    %21 = arith.cmpi eq, %18, %20 : vector<4x128xi32>
    %cst_6 = arith.constant 1.000000e+00 : f32
    %cst_7 = arith.constant 0.000000e+00 : f32
    %22 = vector.broadcast %cst_6 : f32 to vector<4x128xf32>
    %23 = vector.broadcast %cst_7 : f32 to vector<4x128xf32>
    %24 = arith.select %21, %22, %23 : vector<4x128xi1>, vector<4x128xf32>
    %25 = arith.addf %19, %24 : vector<4x128xf32>
    %c2_i32 = arith.constant 2 : i32
    %26 = vector.broadcast %c2_i32 : i32 to vector<4x128xi32>
    %27 = arith.cmpi eq, %18, %26 : vector<4x128xi32>
    %cst_8 = arith.constant 1.41421354 : f32
    %cst_9 = arith.constant 0.000000e+00 : f32
    %28 = vector.broadcast %cst_8 : f32 to vector<4x128xf32>
    %29 = vector.broadcast %cst_9 : f32 to vector<4x128xf32>
    %30 = arith.select %27, %28, %29 : vector<4x128xi1>, vector<4x128xf32>
    %31 = arith.addf %25, %30 : vector<4x128xf32>
    %c3_i32 = arith.constant 3 : i32
    %32 = vector.broadcast %c3_i32 : i32 to vector<4x128xi32>
    %33 = arith.cmpi eq, %18, %32 : vector<4x128xi32>
    %cst_10 = arith.constant 1.73205078 : f32
    %cst_11 = arith.constant 0.000000e+00 : f32
    %34 = vector.broadcast %cst_10 : f32 to vector<4x128xf32>
    %35 = vector.broadcast %cst_11 : f32 to vector<4x128xf32>
    %36 = arith.select %33, %34, %35 : vector<4x128xi1>, vector<4x128xf32>
    %37 = arith.addf %31, %36 : vector<4x128xf32>
    %cst_12 = arith.constant 0.000000e+00 : f32
    %38 = vector.broadcast %cst_12 : f32 to vector<1x128xf32>
    %c0_i32 = arith.constant 0 : i32
    %39 = vector.broadcast %c0_i32 : i32 to vector<1x128xi32>
    %40 = arith.cmpi eq, %1, %39 : vector<1x128xi32>
    %cst_13 = arith.constant 1.000000e-01 : f32
    %cst_14 = arith.constant 0.000000e+00 : f32
    %41 = vector.broadcast %cst_13 : f32 to vector<1x128xf32>
    %42 = vector.broadcast %cst_14 : f32 to vector<1x128xf32>
    %43 = arith.select %40, %41, %42 : vector<1x128xi1>, vector<1x128xf32>
    %44 = arith.addf %38, %43 : vector<1x128xf32>
    %c1_i32_15 = arith.constant 1 : i32
    %45 = vector.broadcast %c1_i32_15 : i32 to vector<1x128xi32>
    %46 = arith.cmpi eq, %1, %45 : vector<1x128xi32>
    %cst_16 = arith.constant 2.000000e-01 : f32
    %cst_17 = arith.constant 0.000000e+00 : f32
    %47 = vector.broadcast %cst_16 : f32 to vector<1x128xf32>
    %48 = vector.broadcast %cst_17 : f32 to vector<1x128xf32>
    %49 = arith.select %46, %47, %48 : vector<1x128xi1>, vector<1x128xf32>
    %50 = arith.addf %44, %49 : vector<1x128xf32>
    %c2_i32_18 = arith.constant 2 : i32
    %51 = vector.broadcast %c2_i32_18 : i32 to vector<1x128xi32>
    %52 = arith.cmpi eq, %1, %51 : vector<1x128xi32>
    %cst_19 = arith.constant 3.000000e-01 : f32
    %cst_20 = arith.constant 0.000000e+00 : f32
    %53 = vector.broadcast %cst_19 : f32 to vector<1x128xf32>
    %54 = vector.broadcast %cst_20 : f32 to vector<1x128xf32>
    %55 = arith.select %52, %53, %54 : vector<1x128xi1>, vector<1x128xf32>
    %56 = arith.addf %50, %55 : vector<1x128xf32>
    %c3_i32_21 = arith.constant 3 : i32
    %57 = vector.broadcast %c3_i32_21 : i32 to vector<1x128xi32>
    %58 = arith.cmpi eq, %1, %57 : vector<1x128xi32>
    %cst_22 = arith.constant 4.000000e-01 : f32
    %cst_23 = arith.constant 0.000000e+00 : f32
    %59 = vector.broadcast %cst_22 : f32 to vector<1x128xf32>
    %60 = vector.broadcast %cst_23 : f32 to vector<1x128xf32>
    %61 = arith.select %58, %59, %60 : vector<1x128xi1>, vector<1x128xf32>
    %62 = arith.addf %56, %61 : vector<1x128xf32>
    %63 = vector.broadcast %62 : vector<1x128xf32> to vector<4x128xf32>
    %64 = arith.mulf %37, %63 : vector<4x128xf32>
    %65 = arith.mulf %14, %64 : vector<4x128xf32>
    %cst_24 = arith.constant dense<0.000000e+00> : vector<128xf32>
    %66 = vector.multi_reduction <add>, %65, %cst_24 [0] : vector<4x128xf32> to vector<128xf32>
    %67 = vector.shape_cast %66 : vector<128xf32> to vector<1x128xf32>
    %cst_25 = arith.constant dense<0.000000e+00> : vector<1xf32>
    %68 = vector.multi_reduction <add>, %67, %cst_25 [1] : vector<1x128xf32> to vector<1xf32>
    %69 = vector.shape_cast %68 : vector<1xf32> to vector<1x1xf32>
    %70 = vector.shape_cast %69 : vector<1x1xf32> to vector<1x1x1xf32>
    %71 = vector.shape_cast %70 : vector<1x1x1xf32> to vector<1x1x1xf32>
    %72 = vector.broadcast %71 : vector<1x1x1xf32> to vector<1x8x128xf32>
    %c0_26 = arith.constant 0 : index
    %c0_27 = arith.constant 0 : index
    %c0_28 = arith.constant 0 : index
    %73 = vector.load %arg3[%c0_26, %c0_27, %c0_28] : memref<1x8x128xf32, #tpu.memory_space<vmem>>, vector<1x8x128xf32>
    tpu.vector_store %arg3[%c0_26, %c0_27, %c0_28], %72 {strides = array<i32>} : memref<1x8x128xf32, #tpu.memory_space<vmem>>, vector<1x8x128xf32>,
    return
  }
  func.func @transform_0(%arg0: i32) -> (i32, i32) {
    %c0_i32 = arith.constant 0 : i32
    %c0_i32_0 = arith.constant 0 : i32
    return %c0_i32, %arg0 : i32, i32
  }
  func.func @transform_1(%arg0: i32) -> (i32, i32) {
    %c0_i32 = arith.constant 0 : i32
    %c0_i32_0 = arith.constant 0 : i32
    return %c0_i32, %arg0 : i32, i32
  }
  func.func @transform_2(%arg0: i32) -> (i32, i32, i32) {
    %c0_i32 = arith.constant 0 : i32
    %c0_i32_0 = arith.constant 0 : i32
    %c0_i32_1 = arith.constant 0 : i32
    return %arg0, %c0_i32, %c0_i32_0 : i32, i32, i32
  }
}

</mosaic_0001>

<llo_original>
// kernel: cdwce_loss.1
$region0: #{cdwce_loss.1}
  #allocation0 [shape = 'u32[]', space=smem, size = 0x4, offset = 0x4, fixed_abs, tag = 'smem constant byte address 0x4 - core index']
  #allocation1 [shape = 'u32[144,128]{1,0:T(1,128)}', space=vmem, size = 0x12000, scoped, tag = 'internal scratch']
  %s0 = inlined_call_operand.vmem [shape: f32[4,128], index: 0, kind: input, shape index: {}]
  %s1 = inlined_call_operand.vmem [shape: s32[1,128], index: 1, kind: input, shape index: {}]
  %s2 = inlined_call_operand.vmem [shape: f32[1,8,128], index: 2, kind: output, shape index: {}]
  %s3 = sld [smem:[#allocation0]]
  $region18: #{cdwce_loss.1} parent=0
    _
  %s5 = ssub.s32 1, %s3
  %s6 = scalar_select 0, %s5, %s3
  // Predicated region
  $region2: #{cdwce_loss.1} parent=0 // pred_check
    _
  $region3: #{cdwce_loss.1} parent=0 // pred_check_branch
    %8 = sbr.rel (0) target = $region5
  $region4: #{cdwce_loss.1} parent=0 // pred_region
    _
  $region5: #{cdwce_loss.1} parent=0 // pred_fallthru
    _
  // Predicated region
  $region6: #{cdwce_loss.1} parent=0 // pred_check
    _
  $region7: #{cdwce_loss.1} parent=0 // pred_check_branch
    %10 = sbr.rel (0) target = $region9
  $region8: #{cdwce_loss.1} parent=0 // pred_region
    _
  $region9: #{cdwce_loss.1} parent=0 // pred_fallthru
    _
  %v11 = vld [vmem:[%s0] sm:$0xf]
  %v12 = vld [vmem:[%s1] sm:$0x1]
  %v13 = vmul.f32 %v11, 1.442695
  %v14 = vpow.pop %v13
  %vm15 = vcmask 1043456
  %v16 = vsel %vm15, %v14, 0.0
  %v17 = vrot.slane %v16, 4
  %v18 = vadd.f32 %v16, %v17
  %v19 = vrot.slane %v18, 2
  %v20 = vadd.f32 %v18, %v19
  %v21 = vrot.slane %v20, 1
  %v22 = vadd.f32 %v20, %v21
  %v23 = vsub.f32 %v22, %v14
  %v24 = vadd.f32 %v23, 1e-08
  %v25 = vlog2.pop %v24
  %v26 = vmul.f32 %v25, 0.6931472
  %v27 = vadd.f32 %v22, 1e-08
  %v28 = vlog2.pop %v27
  %v29 = vmul.f32 %v28, 0.6931472
  %v30 = vsub.f32 %v26, %v29
  %v31 = vlaneseq
  %v32 = vshrl.u32 %v31, 7
  %v33 = vlaneseq
  %v34 = vshrl.u32 %v33, 7
  %v35 = vsub.s32 0, %v34
  %v36 = vrot.slane %v12, %v35
  %v37 = vsub.s32 %v32, %v36
  %vm38 = vcmp.lt.s32.totalorder %v37, 0
  %v39 = vsub.s32 0, %v37
  %v40 = vsel %vm38, %v39, %v37
  %vm41 = vcmp.eq.s32.totalorder %v40, 1
  %v42 = vsel %vm41, 1.0, 0.0
  %v43 = vadd.f32 %v42, 0.0
  %vm44 = vcmp.eq.s32.totalorder %v40, 2
  %v45 = vsel %vm44, 1.4142135, 0.0
  %v46 = vadd.f32 %v43, %v45
  %vm47 = vcmp.eq.s32.totalorder %v40, 3
  %v48 = vsel %vm47, 1.7320508, 0.0
  %v49 = vadd.f32 %v46, %v48
  %vm50 = vcmp.eq.s32.totalorder %v12, 0
  %v51 = vsel %vm50, 0.1, 0.0
  %v52 = vadd.f32 %v51, 0.0
  %vm53 = vcmp.eq.s32.totalorder %v12, 1
  %v54 = vsel %vm53, 0.2, 0.0
  %v55 = vadd.f32 %v52, %v54
  %vm56 = vcmp.eq.s32.totalorder %v12, 2
  %v57 = vsel %vm56, 0.3, 0.0
  %v58 = vadd.f32 %v55, %v57
  %vm59 = vcmp.eq.s32.totalorder %v12, 3
  %v60 = vsel %vm59, 0.4, 0.0
  %v61 = vadd.f32 %v58, %v60
  %v63 = vlaneseq
  %v64 = vshrl.u32 %v63, 7
  %v65 = vsub.s32 0, %v64
  %v66 = vrot.slane %v61, %v65
  %v68 = vmul.f32 %v49, %v66
  %v69 = vmul.f32 %v30, %v68
  %v70 = vsel %vm15, %v69, 0.0
  %v71 = vrot.slane %v70, 4
  %v72 = vadd.f32 %v70, %v71
  %v73 = vrot.slane %v72, 2
  %v74 = vadd.f32 %v72, %v73
  %v75 = vrot.slane %v74, 1
  %v76 = vadd.f32 %v74, %v75
  %77 = vadd.xlane.f32.xlu0 %v76
  %v78 = vpop.xlane.xlu0 %77
  %79 = vst [vmem:[%s2] sm:$0xff] %v78
  // Predicated region
  $region10: #{cdwce_loss.1} parent=0 // pred_check
    _
  $region11: #{cdwce_loss.1} parent=0 // pred_check_branch
    %81 = sbr.rel (0) target = $region13
  $region12: #{cdwce_loss.1} parent=0 // pred_region
    _
  $region13: #{cdwce_loss.1} parent=0 // pred_fallthru
    _
  // Predicated region
  $region14: #{cdwce_loss.1} parent=0 // pred_check
    _
  $region15: #{cdwce_loss.1} parent=0 // pred_check_branch
    %83 = sbr.rel (0) target = $region17
  $region16: #{cdwce_loss.1} parent=0 // pred_region
    _
  $region17: #{cdwce_loss.1} parent=0 // pred_fallthru
    _

</llo_original>
